<compile_context>
chip_gen: v6e
topology: v6e:2x2x1
jax: 0.10.0
libtpu: 0.0.40
codegen_flags: <defaults>
</compile_context>

<pallas_src>
import functools
from itertools import permutations

import numpy as np
import jax
import jax.numpy as jnp
from jax.experimental import pallas as pl
from jax.experimental.pallas import tpu as pltpu


_NEG_PAD = -1e30  # lane-pad sentinel for logits


# ----------------------------------------------------------------------------
# Kernel 1: fused Hungarian cost matrix (segmented softmax + single cost dot)
# ----------------------------------------------------------------------------

def _cost_kernel(x_ref, bd_ref, oh_ref, cost_ref):
    """
    x_ref   : (S, K)  K = C + R*E; [event logits | role logits flattened (r, e)]
    bd_ref  : (K, K)  block-diagonal ones with block sizes [C, E, ..., E]; one dot
                      against it yields each lane's softmax-segment sum of exp.
    oh_ref  : (K, T)  gold one-hots with the cost weights already folded in.
    cost_ref: (S, T)  negated matching cost.
    """
    x = x_ref[...].astype(jnp.float32)
    # A single per-row shift is valid for every softmax segment (shift invariance).
    m = jnp.max(x, axis=-1, keepdims=True)
    e = jnp.exp(x - m)
    z = jnp.dot(e, bd_ref[...], preferred_element_type=jnp.float32)  # per-lane seg sum
    p = e / z                                                        # segmented softmax
    cost_ref[...] = -jnp.dot(p, oh_ref[...], preferred_element_type=jnp.float32)


def compute_cost_matrix(x, bd, oh):
    S, K = x.shape
    T = oh.shape[1]
    return pl.pallas_call(
        _cost_kernel,
        grid=(1,),
        in_specs=[
            pl.BlockSpec((S, K), lambda i: (0, 0)),
            pl.BlockSpec((K, K), lambda i: (0, 0)),
            pl.BlockSpec((K, T), lambda i: (0, 0)),
        ],
        out_specs=pl.BlockSpec((S, T), lambda i: (0, 0)),
        out_shape=jax.ShapeDtypeStruct((S, T), jnp.float32),
        compiler_params=pltpu.CompilerParams(dimension_semantics=("arbitrary",)),
        cost_estimate=pl.CostEstimate(
            flops=int(2 * S * K * K + 2 * S * K * T + 4 * S * K),
            transcendentals=int(S * K),
            bytes_accessed=int(4 * (S * K + K * K + K * T + S * T))),
    )(x, bd, oh)


# ----------------------------------------------------------------------------
# Kernel 2: fused weighted cross-entropy over G row-segments (one pallas_call)
# ----------------------------------------------------------------------------

def _wce_kernel(x_ref, meta_ref, wtab_ref, out_ref):
    """
    Replicates torch: F.cross_entropy(softmax(x), y, weight=w, reduction='mean')
    independently for each segment.

    x_ref   : (N, K)  raw logits; lanes beyond a segment's class count hold -1e30.
    meta_ref: (N, 2)  int32 [label, segment_id]; alignment-pad rows carry seg_id == G.
    wtab_ref: (G, K)  per-segment class weights (zero-padded lanes).
    out_ref : (1, 2G) packed [num_0..num_{G-1}, den_0..den_{G-1}]; loss_g = num_g/den_g.
    """
    x = x_ref[...].astype(jnp.float32)
    N, K = x.shape
    G = wtab_ref.shape[0]
    valid = x > -1e29                                   # pad-lane mask from sentinel

    # softmax(x) over valid lanes (what torch's CE receives as input)
    m1 = jnp.max(x, axis=-1, keepdims=True)
    e1 = jnp.where(valid, jnp.exp(x - m1), 0.0)
    p = e1 / jnp.sum(e1, axis=-1, keepdims=True)

    # log_softmax(p) over valid lanes (what F.cross_entropy applies internally)
    m2 = jnp.max(p, axis=-1, keepdims=True)
    lse = m2 + jnp.log(jnp.sum(jnp.where(valid, jnp.exp(p - m2), 0.0),
                               axis=-1, keepdims=True))
    logq = p - lse

    labels = meta_ref[:, 0:1]                           # (N, 1) int32
    seg = meta_ref[:, 1:2]                              # (N, 1) int32
    lane = jax.lax.broadcasted_iota(jnp.int32, (N, K), 1)
    onehot = (lane == labels).astype(jnp.float32)       # built in-kernel, no (N,K) input
    gidx = jax.lax.broadcasted_iota(jnp.int32, (N, G), 1)
    seg_oh = (gidx == seg).astype(jnp.float32)          # pad rows match no segment

    w_full = jnp.dot(seg_oh, wtab_ref[...], preferred_element_type=jnp.float32)  # (N,K)
    w_row = jnp.sum(w_full * onehot, axis=-1, keepdims=True)                     # w[y_i]
    nll = -jnp.sum(onehot * logq, axis=-1, keepdims=True)                        # (N,1)

    num = jnp.sum(seg_oh * (w_row * nll), axis=0, keepdims=True)   # (1, G)
    den = jnp.sum(seg_oh * w_row, axis=0, keepdims=True)           # (1, G)
    out_ref[...] = jnp.concatenate([num, den], axis=-1)            # single lane-dense row


def fused_weighted_ce(x, meta, wtab):
    N, K = x.shape
    G = wtab.shape[0]
    out = pl.pallas_call(
        _wce_kernel,
        grid=(1,),
        in_specs=[
            pl.BlockSpec((N, K), lambda i: (0, 0)),
            pl.BlockSpec((N, 2), lambda i: (0, 0)),
            pl.BlockSpec((G, K), lambda i: (0, 0)),
        ],
        out_specs=pl.BlockSpec((1, 2 * G), lambda i: (0, 0)),
        out_shape=jax.ShapeDtypeStruct((1, 2 * G), jnp.float32),
        compiler_params=pltpu.CompilerParams(dimension_semantics=("arbitrary",)),
        cost_estimate=pl.CostEstimate(
            flops=int(2 * N * G * K + 16 * N * K),
            transcendentals=int(2 * N * K + 2 * N),
            bytes_accessed=int(4 * (N * K + G * K + 2 * G) + 8 * N)),
    )(x, meta, wtab)
    nums = out[0, :G]
    dens = out[0, G:]
    return nums / dens          # per-segment weighted-mean losses, shape (G,)


# ----------------------------------------------------------------------------
# Static tables (built once per shape, embedded as constants under jit)
# ----------------------------------------------------------------------------

@functools.lru_cache(maxsize=None)
def _block_diag_ones(sizes):
    k = int(sum(sizes))
    m = np.zeros((k, k), np.float32)
    off = 0
    for s in sizes:
        m[off:off + s, off:off + s] = 1.0
        off += s
    return m


@functools.lru_cache(maxsize=None)
def _perm_table(num_sets, num_targets):
    # TODO(synk): exact Hungarian (scipy.optimize.linear_sum_assignment) is a sequential
    # host algorithm with no Pallas equivalent; this static permutation table + on-device
    # argmin is exact for the small set sizes used by this module (requires S >= T).
    return np.array(list(permutations(range(num_sets), num_targets)), dtype=np.int32)


# ----------------------------------------------------------------------------
# Matcher pieces (shared by the matcher class and the jitted criterion forward)
# ----------------------------------------------------------------------------

def _matcher_cost(event_logps, role_logits, gold_event, gold_role,
                  cost_event_type, cost_role):
    S, R, E = role_logits.shape
    C = event_logps.shape[1]
    T = gold_role.shape[0]
    x = jnp.concatenate([event_logps.astype(jnp.float32),
                         role_logits.reshape(S, R * E).astype(jnp.float32)], axis=-1)
    bd = jnp.asarray(_block_diag_ones(tuple([C] + [E] * R)))
    # fold the cost weights into the gold one-hots -> single negated dot in the kernel
    oh_event = cost_event_type * jax.nn.one_hot(gold_event, C, dtype=jnp.float32).T   # (C,T)
    oh_role = cost_role * jax.nn.one_hot(gold_role, E, dtype=jnp.float32)             # (T,R,E)
    oh = jnp.concatenate(
        [oh_event, jnp.transpose(oh_role, (1, 2, 0)).reshape(R * E, T)], axis=0)      # (C+R*E,T)
    return compute_cost_matrix(x, bd, oh)


def hungarian_assignment(cost):
    """On-device brute-force min-cost assignment. Returns (rows, cols) with rows sorted
    ascending, matching scipy.linear_sum_assignment's convention."""
    S, T = cost.shape
    perms = jnp.asarray(_perm_table(S, T))                      # (P, T): row for target t
    t_idx = jnp.arange(T, dtype=jnp.int32)[None, :]
    totals = jnp.sum(cost[perms, t_idx], axis=1)                # (P,)
    rows_by_target = perms[jnp.argmin(totals)]                  # (T,)
    order = jnp.argsort(rows_by_target)
    return rows_by_target[order], order.astype(jnp.int32)


# ----------------------------------------------------------------------------
# Fused, fully on-device criterion forward
# ----------------------------------------------------------------------------

def _build_ce_inputs(segments, kmax):
    """segments: list of (logits (n, k), labels (n,), class_weight (k,)).
    Returns the row-concatenated, lane-padded inputs for the fused CE kernel."""
    xs, metas, ws = [], [], []
    for g, (lg, lb, w) in enumerate(segments):
        n, k = lg.shape
        lg = lg.astype(jnp.float32)
        if k < kmax:
            lg = jnp.pad(lg, ((0, 0), (0, kmax - k)), constant_values=_NEG_PAD)
        xs.append(lg)
        metas.append(jnp.stack([lb.astype(jnp.int32),
                                jnp.full((n,), g, jnp.int32)], axis=1))
        ws.append(jnp.pad(w.astype(jnp.float32), (0, kmax - w.shape[0])))
    x = jnp.concatenate(xs, axis=0)
    meta = jnp.concatenate(metas, axis=0)
    G = len(segments)
    pad = (-x.shape[0]) % 8                       # sublane-align the total row count
    if pad:
        x = jnp.concatenate([x, jnp.zeros((pad, kmax), jnp.float32)], axis=0)
        meta = jnp.concatenate(
            [meta, jnp.stack([jnp.zeros((pad,), jnp.int32),
                              jnp.full((pad,), G, jnp.int32)], axis=1)], axis=0)
    return x, meta, jnp.stack(ws, axis=0)


@functools.partial(jax.jit, static_argnames=(
    "num_classes", "nopair", "cost_event_type", "cost_role"))
def _set_criterion_forward(event_logps, role_logits, gold_event, gold_role,
                           type_weight, *, num_classes, nopair,
                           cost_event_type, cost_role):
    S, R, E = role_logits.shape
    C = event_logps.shape[1]
    T = gold_role.shape[0]

    if num_classes == 2:
        gold_event = jnp.zeros_like(gold_event)

    # ---- Hungarian matcher: fused cost kernel + on-device assignment (no host sync) --
    cost = _matcher_cost(event_logps, role_logits, gold_event, gold_role,
                         cost_event_type, cost_role)
    rows, cols = hungarian_assignment(cost)

    # ---- gather matched pairs (softmax commutes with row gather; the CE kernel applies
    #      softmax + log_softmax, matching the torch module) ----
    sel_role_logits = role_logits[rows]                       # (T, R, E)
    sel_gold_role = gold_role[cols]                           # (T, R)

    key_w = jnp.ones((E,), jnp.float32)                       # key_role_weight[-1] = 1
    rest_w = jnp.ones((E,), jnp.float32).at[-1].set(0.2)
    gold_event_label = (jnp.full((S,), num_classes - 1, jnp.int32)
                        .at[rows].set(gold_event))

    segments = [
        (sel_role_logits[:, :R - 2].reshape(-1, E),
         sel_gold_role[:, :R - 2].reshape(-1), key_w),
        (sel_role_logits[:, R - 2:].reshape(-1, E),
         sel_gold_role[:, R - 2:].reshape(-1), rest_w),
        (event_logps, gold_event_label, type_weight.astype(jnp.float32)),
    ]
    use_other = nopair and S > T
    if use_other:
        unmatched = jnp.ones((S,), bool).at[rows].set(False)
        other_idx = jnp.nonzero(unmatched, size=S - T)[0]     # static count S - T
        other_logits = role_logits[other_idx].reshape(-1, E)
        segments.append((other_logits,
                         jnp.full((other_logits.shape[0],), E - 1, jnp.int32),
                         jnp.ones((E,), jnp.float32)))

    x, meta, wtab = _build_ce_inputs(segments, max(E, C))
    seg_loss = fused_weighted_ce(x, meta, wtab)               # (G,) per-segment means

    loss = seg_loss[0] + seg_loss[1] + seg_loss[2]            # key + rest + event_type
    if use_other:
        loss = loss + 0.2 * seg_loss[3]
    return loss


# ----------------------------------------------------------------------------
# Module ports
# ----------------------------------------------------------------------------

class HungarianMatcherJAX:
    """API-parity port; the fused SetCriterionJAX forward inlines the same helpers."""

    def __init__(self, cost_weight, matcher, num_event_type):
        self.cost_event_type = float(cost_weight['event_type'])
        self.cost_role = float(cost_weight['role'])
        self.matcher = matcher
        self.num_event_type = num_event_type

    def __call__(self, outputs, targets):
        assert self.matcher == 'avg'
        role_logits = outputs['pred_role_logits']
        event_logps = outputs['pred_doc_event_logps']
        gold_event = jnp.asarray(targets['doc_event_label'], jnp.int32)
        if self.num_event_type == 2:
            gold_event = jnp.zeros_like(gold_event)
        gold_role = jnp.asarray(
            [rl for rl in targets['role_label'] if rl is not None], jnp.int32)
        cost = _matcher_cost(event_logps, role_logits, gold_event, gold_role,
                             self.cost_event_type, self.cost_role)
        rows, cols = hungarian_assignment(cost)
        return jnp.stack([rows, cols]).astype(jnp.int32)      # (2, T), stays on device


class SetCriterionJAX:
    def __init__(self, config, num_classes, event_type_weight=False,
                 cost_weight=None, na_coef=0.1, losses=('event', 'role'),
                 matcher='avg'):
        self.num_classes = num_classes
        self.matcher = HungarianMatcherJAX(cost_weight, matcher, num_classes)
        self.losses = losses
        self.cost_weight = cost_weight
        if event_type_weight:
            self.type_weight = jnp.asarray(event_type_weight, jnp.float32)
        else:
            tw = np.ones(num_classes, np.float32)
            tw[-1] = na_coef
            self.type_weight = jnp.asarray(tw)
        self.config = config

    def __call__(self, outputs, targets):
        gold_event = jnp.asarray(targets['doc_event_label'], jnp.int32)
        # filter None role lists consistently with the matcher
        gold_role = jnp.asarray(
            [rl for rl in targets['role_label'] if rl is not None], jnp.int32)
        nopair = bool(getattr(self.config, 'laap_train_nopair_sets', False))
        return _set_criterion_forward(
            outputs['pred_doc_event_logps'], outputs['pred_role_logits'],
            gold_event, gold_role, self.type_weight,
            num_classes=self.num_classes, nopair=nopair,
            cost_event_type=self.matcher.cost_event_type,
            cost_role=self.matcher.cost_role)


# ----------------------------------------------------------------------------
# Demo
# ----------------------------------------------------------------------------

class _Cfg:
    laap_train_nopair_sets = True


if __name__ == "__main__":
    S, R, E, C, T = 8, 6, 10, 5, 3   # sets, roles, entities, event types, targets

    key = jax.random.PRNGKey(0)
    k1, k2 = jax.random.split(key)
    outputs = {
        'pred_doc_event_logps': jax.random.normal(k1, (S, C), jnp.float32),
        'pred_role_logits': jax.random.normal(k2, (S, R, E), jnp.float32),
    }
    targets = {
        'doc_event_label': [1, 0, 3],                                  # (T,)
        'role_label': [[0, 3, 5, 2, 9, 9],                             # (T, R)
                       [1, 1, 4, 6, 9, 8],
                       [2, 7, 0, 5, 8, 9]],
    }

    criterion = SetCriterionJAX(
        config=_Cfg(),
        num_classes=C,
        event_type_weight=False,
        cost_weight={'event_type': 1.0, 'role': 0.5},
        na_coef=0.1,
        losses=['event', 'role'],
        matcher='avg',
    )

    loss = criterion(outputs, targets)
    jax.block_until_ready(loss)
    assert jnp.isfinite(loss)
    print("KERNEL_OK")
</pallas_src>

<mosaic_0001>
module attributes {stable_mosaic.version = 11 : i64} {
  func.func private @main(%arg0: i32) attributes {dimension_semantics = [#tpu.dimension_semantics<core_parallel>], iteration_bounds = array<i64: 2>, tpu.core_type = #tpu.core_type<sc_scalar_subcore>, window_params = []} {
    return
  }
}

module attributes {stable_mosaic.version = 11 : i64} {
  func.func private @main(%arg0: i32) attributes {dimension_semantics = [#tpu.dimension_semantics<core_parallel>], iteration_bounds = array<i64: 2>, tpu.core_type = #tpu.core_type<sc_scalar_subcore>, window_params = []} {
    return
  }
}

module attributes {stable_mosaic.version = 11 : i64} {
  func.func @_cost_kernel(%arg0: i32, %arg1: memref<8x65xf32, #tpu.memory_space<vmem>>, %arg2: memref<65x65xf32, #tpu.memory_space<vmem>>, %arg3: memref<65x3xf32, #tpu.memory_space<vmem>>, %arg4: memref<8x3xf32, #tpu.memory_space<vmem>>) attributes {dimension_semantics = [#tpu.dimension_semantics<arbitrary>], iteration_bounds = array<i64: 1>, scalar_prefetch = 0 : i64, scratch_operands = 0 : i64, tpu.core_type = #tpu.core_type<tc>, window_params = [{pipeline_mode = #tpu.pipeline_mode<synchronous>, transform_indices = @transform_0, window_bounds = array<i64: 8, 65>}, {pipeline_mode = #tpu.pipeline_mode<synchronous>, transform_indices = @transform_1, window_bounds = array<i64: 65, 65>}, {pipeline_mode = #tpu.pipeline_mode<synchronous>, transform_indices = @transform_2, window_bounds = array<i64: 65, 3>}, {pipeline_mode = #tpu.pipeline_mode<synchronous>, transform_indices = @transform_3, window_bounds = array<i64: 8, 3>}]} {
    %c0 = arith.constant 0 : index
    %c0_0 = arith.constant 0 : index
    %0 = vector.load %arg1[%c0, %c0_0] : memref<8x65xf32, #tpu.memory_space<vmem>>, vector<8x65xf32>
    %cst = arith.constant dense<0xFF800000> : vector<8xf32>
    %1 = vector.multi_reduction <maximumf>, %0, %cst [1] : vector<8x65xf32> to vector<8xf32>
    %2 = vector.shape_cast %1 : vector<8xf32> to vector<8x1xf32>
    %3 = vector.broadcast %2 : vector<8x1xf32> to vector<8x65xf32>
    %4 = arith.subf %0, %3 : vector<8x65xf32>
    %5 = math.exp %4 : vector<8x65xf32>
    %c0_1 = arith.constant 0 : index
    %c0_2 = arith.constant 0 : index
    %6 = vector.load %arg2[%c0_1, %c0_2] : memref<65x65xf32, #tpu.memory_space<vmem>>, vector<65x65xf32>
    %cst_3 = arith.constant dense<0.000000e+00> : vector<8x65xf32>
    %7 = tpu.matmul %5, %6, %cst_3 {dimension_numbers = #tpu.dot_dimension_numbers<[1], [0], [0], [1], [0, 0, 1, 1], [], []>} : vector<8x65xf32>, vector<65x65xf32>, vector<8x65xf32> -> vector<8x65xf32>
    %8 = arith.divf %5, %7 : vector<8x65xf32>
    %c0_4 = arith.constant 0 : index
    %c0_5 = arith.constant 0 : index
    %9 = vector.load %arg3[%c0_4, %c0_5] : memref<65x3xf32, #tpu.memory_space<vmem>>, vector<65x3xf32>
    %cst_6 = arith.constant dense<0.000000e+00> : vector<8x3xf32>
    %10 = tpu.matmul %8, %9, %cst_6 {dimension_numbers = #tpu.dot_dimension_numbers<[1], [0], [0], [1], [0, 0, 1, 1], [], []>} : vector<8x65xf32>, vector<65x3xf32>, vector<8x3xf32> -> vector<8x3xf32>
    %cst_7 = arith.constant 0.000000e+00 : f32
    %11 = vector.broadcast %cst_7 : f32 to vector<8x3xf32>
    %12 = arith.subf %11, %10 : vector<8x3xf32>
    %c0_8 = arith.constant 0 : index
    %c0_9 = arith.constant 0 : index
    %13 = vector.load %arg4[%c0_8, %c0_9] : memref<8x3xf32, #tpu.memory_space<vmem>>, vector<8x3xf32>
    tpu.vector_store %arg4[%c0_8, %c0_9], %12 {strides = array<i32>} : memref<8x3xf32, #tpu.memory_space<vmem>>, vector<8x3xf32>,
    return
  }
  func.func @transform_0(%arg0: i32) -> (i32, i32) {
    %c0_i32 = arith.constant 0 : i32
    %c0_i32_0 = arith.constant 0 : i32
    %c0_i32_1 = arith.constant 0 : i32
    return %c0_i32, %c0_i32_0 : i32, i32
  }
  func.func @transform_1(%arg0: i32) -> (i32, i32) {
    %c0_i32 = arith.constant 0 : i32
    %c0_i32_0 = arith.constant 0 : i32
    %c0_i32_1 = arith.constant 0 : i32
    return %c0_i32, %c0_i32_0 : i32, i32
  }
  func.func @transform_2(%arg0: i32) -> (i32, i32) {
    %c0_i32 = arith.constant 0 : i32
    %c0_i32_0 = arith.constant 0 : i32
    %c0_i32_1 = arith.constant 0 : i32
    return %c0_i32, %c0_i32_0 : i32, i32
  }
  func.func @transform_3(%arg0: i32) -> (i32, i32) {
    %c0_i32 = arith.constant 0 : i32
    %c0_i32_0 = arith.constant 0 : i32
    %c0_i32_1 = arith.constant 0 : i32
    return %c0_i32, %c0_i32_0 : i32, i32
  }
}

module attributes {stable_mosaic.version = 11 : i64} {
  func.func @_wce_kernel(%arg0: i32, %arg1: memref<56x10xf32, #tpu.memory_space<vmem>>, %arg2: memref<56x2xi32, #tpu.memory_space<vmem>>, %arg3: memref<4x10xf32, #tpu.memory_space<vmem>>, %arg4: memref<1x8xf32, #tpu.memory_space<vmem>>) attributes {dimension_semantics = [#tpu.dimension_semantics<arbitrary>], iteration_bounds = array<i64: 1>, scalar_prefetch = 0 : i64, scratch_operands = 0 : i64, tpu.core_type = #tpu.core_type<tc>, window_params = [{pipeline_mode = #tpu.pipeline_mode<synchronous>, transform_indices = @transform_0, window_bounds = array<i64: 56, 10>}, {pipeline_mode = #tpu.pipeline_mode<synchronous>, transform_indices = @transform_1, window_bounds = array<i64: 56, 2>}, {pipeline_mode = #tpu.pipeline_mode<synchronous>, transform_indices = @transform_2, window_bounds = array<i64: 4, 10>}, {pipeline_mode = #tpu.pipeline_mode<synchronous>, transform_indices = @transform_3, window_bounds = array<i64: 1, 8>}]} {
    %c0 = arith.constant 0 : index
    %c0_0 = arith.constant 0 : index
    %0 = vector.load %arg1[%c0, %c0_0] : memref<56x10xf32, #tpu.memory_space<vmem>>, vector<56x10xf32>
    %cst = arith.constant -1.000000e+29 : f32
    %1 = vector.broadcast %cst : f32 to vector<56x10xf32>
    %2 = arith.cmpf ogt, %0, %1 : vector<56x10xf32>
    %cst_1 = arith.constant dense<0xFF800000> : vector<56xf32>
    %3 = vector.multi_reduction <maximumf>, %0, %cst_1 [1] : vector<56x10xf32> to vector<56xf32>
    %4 = vector.shape_cast %3 : vector<56xf32> to vector<56x1xf32>
    %5 = vector.broadcast %4 : vector<56x1xf32> to vector<56x10xf32>
    %6 = arith.subf %0, %5 : vector<56x10xf32>
    %7 = math.exp %6 : vector<56x10xf32>
    %cst_2 = arith.constant 0.000000e+00 : f32
    %8 = vector.broadcast %cst_2 : f32 to vector<56x10xf32>
    %9 = arith.select %2, %7, %8 : vector<56x10xi1>, vector<56x10xf32>
    %cst_3 = arith.constant dense<0.000000e+00> : vector<56xf32>
    %10 = vector.multi_reduction <add>, %9, %cst_3 [1] : vector<56x10xf32> to vector<56xf32>
    %11 = vector.shape_cast %10 : vector<56xf32> to vector<56x1xf32>
    %12 = vector.broadcast %11 : vector<56x1xf32> to vector<56x10xf32>
    %13 = arith.divf %9, %12 : vector<56x10xf32>
    %cst_4 = arith.constant dense<0xFF800000> : vector<56xf32>
    %14 = vector.multi_reduction <maximumf>, %13, %cst_4 [1] : vector<56x10xf32> to vector<56xf32>
    %15 = vector.shape_cast %14 : vector<56xf32> to vector<56x1xf32>
    %16 = vector.broadcast %15 : vector<56x1xf32> to vector<56x10xf32>
    %17 = arith.subf %13, %16 : vector<56x10xf32>
    %18 = math.exp %17 : vector<56x10xf32>
    %cst_5 = arith.constant 0.000000e+00 : f32
    %19 = vector.broadcast %cst_5 : f32 to vector<56x10xf32>
    %20 = arith.select %2, %18, %19 : vector<56x10xi1>, vector<56x10xf32>
    %cst_6 = arith.constant dense<0.000000e+00> : vector<56xf32>
    %21 = vector.multi_reduction <add>, %20, %cst_6 [1] : vector<56x10xf32> to vector<56xf32>
    %22 = vector.shape_cast %21 : vector<56xf32> to vector<56x1xf32>
    %23 = math.log %22 : vector<56x1xf32>
    %24 = arith.addf %15, %23 : vector<56x1xf32>
    %25 = vector.broadcast %24 : vector<56x1xf32> to vector<56x10xf32>
    %26 = arith.subf %13, %25 : vector<56x10xf32>
    %c0_7 = arith.constant 0 : index
    %c0_8 = arith.constant 0 : index
    %27 = vector.load %arg2[%c0_7, %c0_8] : memref<56x2xi32, #tpu.memory_space<vmem>>, vector<56x1xi32>
    %c0_9 = arith.constant 0 : index
    %c1 = arith.constant 1 : index
    %28 = vector.load %arg2[%c0_9, %c1] : memref<56x2xi32, #tpu.memory_space<vmem>>, vector<56x1xi32>
    %29 = tpu.iota {dimensions = array<i32: 1>} : vector<56x10xi32>
    %30 = vector.broadcast %27 : vector<56x1xi32> to vector<56x10xi32>
    %31 = arith.cmpi eq, %29, %30 : vector<56x10xi32>
    %32 = arith.extui %31 : vector<56x10xi1> to vector<56x10xi32>
    %33 = arith.sitofp %32 : vector<56x10xi32> to vector<56x10xf32>
    %34 = tpu.iota {dimensions = array<i32: 1>} : vector<56x4xi32>
    %35 = vector.broadcast %28 : vector<56x1xi32> to vector<56x4xi32>
    %36 = arith.cmpi eq, %34, %35 : vector<56x4xi32>
    %37 = arith.extui %36 : vector<56x4xi1> to vector<56x4xi32>
    %38 = arith.sitofp %37 : vector<56x4xi32> to vector<56x4xf32>
    %c0_10 = arith.constant 0 : index
    %c0_11 = arith.constant 0 : index
    %39 = vector.load %arg3[%c0_10, %c0_11] : memref<4x10xf32, #tpu.memory_space<vmem>>, vector<4x10xf32>
    %cst_12 = arith.constant dense<0.000000e+00> : vector<56x10xf32>
    %40 = tpu.matmul %38, %39, %cst_12 {dimension_numbers = #tpu.dot_dimension_numbers<[1], [0], [0], [1], [0, 0, 1, 1], [], []>} : vector<56x4xf32>, vector<4x10xf32>, vector<56x10xf32> -> vector<56x10xf32>
    %41 = arith.mulf %40, %33 : vector<56x10xf32>
    %cst_13 = arith.constant dense<0.000000e+00> : vector<56xf32>
    %42 = vector.multi_reduction <add>, %41, %cst_13 [1] : vector<56x10xf32> to vector<56xf32>
    %43 = vector.shape_cast %42 : vector<56xf32> to vector<56x1xf32>
    %44 = arith.mulf %33, %26 : vector<56x10xf32>
    %cst_14 = arith.constant dense<0.000000e+00> : vector<56xf32>
    %45 = vector.multi_reduction <add>, %44, %cst_14 [1] : vector<56x10xf32> to vector<56xf32>
    %46 = vector.shape_cast %45 : vector<56xf32> to vector<56x1xf32>
    %cst_15 = arith.constant 0.000000e+00 : f32
    %47 = vector.broadcast %cst_15 : f32 to vector<56x1xf32>
    %48 = arith.subf %47, %46 : vector<56x1xf32>
    %49 = arith.mulf %43, %48 : vector<56x1xf32>
    %50 = vector.broadcast %49 : vector<56x1xf32> to vector<56x4xf32>
    %51 = arith.mulf %38, %50 : vector<56x4xf32>
    %cst_16 = arith.constant dense<0.000000e+00> : vector<4xf32>
    %52 = vector.multi_reduction <add>, %51, %cst_16 [0] : vector<56x4xf32> to vector<4xf32>
    %53 = vector.shape_cast %52 : vector<4xf32> to vector<1x4xf32>
    %54 = vector.broadcast %43 : vector<56x1xf32> to vector<56x4xf32>
    %55 = arith.mulf %38, %54 : vector<56x4xf32>
    %cst_17 = arith.constant dense<0.000000e+00> : vector<4xf32>
    %56 = vector.multi_reduction <add>, %55, %cst_17 [0] : vector<56x4xf32> to vector<4xf32>
    %57 = vector.shape_cast %56 : vector<4xf32> to vector<1x4xf32>
    %58 = tpu.concatenate %53, %57 in 1 : vector<1x4xf32>, vector<1x4xf32> -> vector<1x8xf32>
    %c0_18 = arith.constant 0 : index
    %c0_19 = arith.constant 0 : index
    %59 = vector.load %arg4[%c0_18, %c0_19] : memref<1x8xf32, #tpu.memory_space<vmem>>, vector<1x8xf32>
    tpu.vector_store %arg4[%c0_18, %c0_19], %58 {strides = array<i32>} : memref<1x8xf32, #tpu.memory_space<vmem>>, vector<1x8xf32>,
    return
  }
  func.func @transform_0(%arg0: i32) -> (i32, i32) {
    %c0_i32 = arith.constant 0 : i32
    %c0_i32_0 = arith.constant 0 : i32
    %c0_i32_1 = arith.constant 0 : i32
    return %c0_i32, %c0_i32_0 : i32, i32
  }
  func.func @transform_1(%arg0: i32) -> (i32, i32) {
    %c0_i32 = arith.constant 0 : i32
    %c0_i32_0 = arith.constant 0 : i32
    %c0_i32_1 = arith.constant 0 : i32
    return %c0_i32, %c0_i32_0 : i32, i32
  }
  func.func @transform_2(%arg0: i32) -> (i32, i32) {
    %c0_i32 = arith.constant 0 : i32
    %c0_i32_0 = arith.constant 0 : i32
    %c0_i32_1 = arith.constant 0 : i32
    return %c0_i32, %c0_i32_0 : i32, i32
  }
  func.func @transform_3(%arg0: i32) -> (i32, i32) {
    %c0_i32 = arith.constant 0 : i32
    %c0_i32_0 = arith.constant 0 : i32
    %c0_i32_1 = arith.constant 0 : i32
    return %c0_i32, %c0_i32_0 : i32, i32
  }
}

</mosaic_0001>

<llo_original>
// kernel: _set_criterion_forward.2
$region0: #{_set_criterion_forward.2}
  #allocation0 [shape = 'u32[]', space=smem, size = 0x4, offset = 0x4, fixed_abs, tag = 'smem constant byte address 0x4 - core index']
  #allocation1 [shape = 'u32[144,128]{1,0:T(1,128)}', space=vmem, size = 0x12000, scoped, tag = 'internal scratch']
  %s0 = inlined_call_operand.vmem [shape: f32[8,65], index: 0, kind: input, shape index: {}]
  %s1 = inlined_call_operand.vmem [shape: f32[65,65], index: 1, kind: input, shape index: {}]
  %s2 = inlined_call_operand.vmem [shape: f32[65,3], index: 2, kind: input, shape index: {}]
  %s3 = inlined_call_operand.vmem [shape: f32[8,3], index: 3, kind: output, shape index: {}]
  %s4 = sld [smem:[#allocation0]]
  $region22: #{_set_criterion_forward.2} parent=0
    _
  %s6 = ssub.s32 1, %s4
  %s7 = scalar_select 0, %s6, %s4
  // Predicated region
  $region2: #{_set_criterion_forward.2} parent=0 // pred_check
    _
  $region3: #{_set_criterion_forward.2} parent=0 // pred_check_branch
    %9 = sbr.rel (0) target = $region5
  $region4: #{_set_criterion_forward.2} parent=0 // pred_region
    _
  $region5: #{_set_criterion_forward.2} parent=0 // pred_fallthru
    _
  // Predicated region
  $region6: #{_set_criterion_forward.2} parent=0 // pred_check
    _
  $region7: #{_set_criterion_forward.2} parent=0 // pred_check_branch
    %11 = sbr.rel (0) target = $region9
  $region8: #{_set_criterion_forward.2} parent=0 // pred_region
    _
  $region9: #{_set_criterion_forward.2} parent=0 // pred_fallthru
    _
  // Predicated region
  $region10: #{_set_criterion_forward.2} parent=0 // pred_check
    _
  $region11: #{_set_criterion_forward.2} parent=0 // pred_check_branch
    %13 = sbr.rel (0) target = $region13
  $region12: #{_set_criterion_forward.2} parent=0 // pred_region
    _
  $region13: #{_set_criterion_forward.2} parent=0 // pred_fallthru
    _
  %v14 = vld [vmem:[%s0] sm:$0xff]
  %vm15 = vcmask 531456
  %v16 = vsel %vm15, %v14, -inf
  %17 = vmax.xlane.f32.xlu0 %v16
  %v18 = vpop.xlane.xlu0 %17
  %v19 = vsub.f32 %v14, %v18
  %v20 = vmul.f32 %v19, 1.442695
  %v21 = vpow.pop %v20
  %v22 = vld [vmem:[%s1] sm:$0xff]
  %v23 = vld [vmem:[%s1 + $0x8] sm:$0xff]
  %v24 = vld [vmem:[%s1 + $0x10] sm:$0xff]
  %v25 = vld [vmem:[%s1 + $0x18] sm:$0xff]
  %v26 = vld [vmem:[%s1 + $0x20] sm:$0xff]
  %v27 = vld [vmem:[%s1 + $0x28] sm:$0xff]
  %v28 = vld [vmem:[%s1 + $0x30] sm:$0xff]
  %v29 = vld [vmem:[%s1 + $0x38] sm:$0xff]
  %v30 = vld [vmem:[%s1 + $0x40] sm:$0x1]
  %v32 = vsel %vm15, %v21, 0
  %vm34 = vcmask 1040384
  %v36 = vsel %vm34, %v30, 0
  %38 = vmatprep.subr.mxu0 0.0
  %39 = vmatpush1.msra.mxu0 0.0
  %40 = vmatprep.subr.mxu0 0.0
  %41 = vmatpush1.msra.mxu0 0.0
  %42 = vmatprep.subr.mxu0 0.0
  %43 = vmatpush1.msra.mxu0 0.0
  %44 = vmatprep.subr.mxu0 0.0
  %45 = vmatpush1.msra.mxu0 0.0
  %46 = vmatprep.subr.mxu0 0.0
  %47 = vmatpush1.msra.mxu0 0.0
  %48 = vmatprep.subr.mxu0 0.0
  %49 = vmatpush1.msra.mxu0 0.0
  %50 = vmatprep.subr.mxu0 0.0
  %51 = vmatpush1.msra.mxu0 0.0
  %52 = vmatprep.subr.mxu0 0.0
  %53 = vmatpush1.msra.mxu0 %v36
  %54 = vmatprep.subr.mxu0 0.0
  %55 = vmatpush1.msra.mxu0 %v29
  %56 = vmatprep.subr.mxu0 0.0
  %57 = vmatpush1.msra.mxu0 %v28
  %58 = vmatprep.subr.mxu0 0.0
  %59 = vmatpush1.msra.mxu0 %v27
  %60 = vmatprep.subr.mxu0 0.0
  %61 = vmatpush1.msra.mxu0 %v26
  %62 = vmatprep.subr.mxu0 0.0
  %63 = vmatpush1.msra.mxu0 %v25
  %64 = vmatprep.subr.mxu0 0.0
  %65 = vmatpush1.msra.mxu0 %v24
  %66 = vmatprep.subr.mxu0 0.0
  %67 = vmatpush1.msra.mxu0 %v23
  %68 = vmatprep.subr.mxu0 0.0
  %69 = vmatpush1.msra.mxu0 %v22
  %70 = vmatprep.subr.mxu0 0.0
  %71 = vmatpush2.msra.mxu0 0.0
  %72 = vmatprep.subr.mxu0 0.0
  %73 = vmatpush2.msra.mxu0 0.0
  %74 = vmatprep.subr.mxu0 0.0
  %75 = vmatpush2.msra.mxu0 0.0
  %76 = vmatprep.subr.mxu0 0.0
  %77 = vmatpush2.msra.mxu0 0.0
  %78 = vmatprep.subr.mxu0 0.0
  %79 = vmatpush2.msra.mxu0 0.0
  %80 = vmatprep.subr.mxu0 0.0
  %81 = vmatpush2.msra.mxu0 0.0
  %82 = vmatprep.subr.mxu0 0.0
  %83 = vmatpush2.msra.mxu0 0.0
  %84 = vmatprep.subr.mxu0 0.0
  %85 = vmatpush2.msra.mxu0 0.0
  %86 = vmatprep.subr.mxu0 0.0
  %87 = vmatpush2.msra.mxu0 0.0
  %88 = vmatprep.subr.mxu0 0.0
  %89 = vmatpush2.msra.mxu0 0.0
  %90 = vmatprep.subr.mxu0 0.0
  %91 = vmatpush2.msra.mxu0 0.0
  %92 = vmatprep.subr.mxu0 0.0
  %93 = vmatpush2.msra.mxu0 0.0
  %94 = vmatprep.subr.mxu0 0.0
  %95 = vmatpush2.msra.mxu0 0.0
  %96 = vmatprep.subr.mxu0 0.0
  %97 = vmatpush2.msra.mxu0 0.0
  %98 = vmatprep.subr.mxu0 0.0
  %99 = vmatpush2.msra.mxu0 0.0
  %100 = vmatprep.subr.mxu0 0.0
  %101 = vmatpush2.msra.mxu0 0.0
  %102 = vmatprep.mubr.f32.mxu0 0.0
  %103 = vmatmul.mubr.f32.gmra.mxu0 %v32
  %v104 = vpop.f32.mrf.mxu0
  %v105 = vadd.f32 0.0, %v104
  %v106 = vpop.f32.mrf.mxu0
  %107 = vdwg.mxu0
  %v108 = vrcp.pop %v105
  %v109 = vmul.f32 %v21, %v108
  %v110 = vld [vmem:[%s2] sm:$0xff]
  %v111 = vld [vmem:[%s2 + $0x8] sm:$0xff]
  %v112 = vld [vmem:[%s2 + $0x10] sm:$0xff]
  %v113 = vld [vmem:[%s2 + $0x18] sm:$0xff]
  %v114 = vld [vmem:[%s2 + $0x20] sm:$0xff]
  %v115 = vld [vmem:[%s2 + $0x28] sm:$0xff]
  %v116 = vld [vmem:[%s2 + $0x30] sm:$0xff]
  %v117 = vld [vmem:[%s2 + $0x38] sm:$0xff]
  %v118 = vld [vmem:[%s2 + $0x40] sm:$0x1]
  %v120 = vsel %vm15, %v109, 0
  %v123 = vsel %vm34, %v118, 0
  %125 = vmatprep.subr.mxu0 0.0
  %126 = vmatpush1.msra.mxu0 0.0
  %127 = vmatprep.subr.mxu0 0.0
  %128 = vmatpush1.msra.mxu0 0.0
  %129 = vmatprep.subr.mxu0 0.0
  %130 = vmatpush1.msra.mxu0 0.0
  %131 = vmatprep.subr.mxu0 0.0
  %132 = vmatpush1.msra.mxu0 0.0
  %133 = vmatprep.subr.mxu0 0.0
  %134 = vmatpush1.msra.mxu0 0.0
  %135 = vmatprep.subr.mxu0 0.0
  %136 = vmatpush1.msra.mxu0 0.0
  %137 = vmatprep.subr.mxu0 0.0
  %138 = vmatpush1.msra.mxu0 0.0
  %139 = vmatprep.subr.mxu0 0.0
  %140 = vmatpush1.msra.mxu0 %v123
  %141 = vmatprep.subr.mxu0 0.0
  %142 = vmatpush1.msra.mxu0 %v117
  %143 = vmatprep.subr.mxu0 0.0
  %144 = vmatpush1.msra.mxu0 %v116
  %145 = vmatprep.subr.mxu0 0.0
  %146 = vmatpush1.msra.mxu0 %v115
  %147 = vmatprep.subr.mxu0 0.0
  %148 = vmatpush1.msra.mxu0 %v114
  %149 = vmatprep.subr.mxu0 0.0
  %150 = vmatpush1.msra.mxu0 %v113
  %151 = vmatprep.subr.mxu0 0.0
  %152 = vmatpush1.msra.mxu0 %v112
  %153 = vmatprep.subr.mxu0 0.0
  %154 = vmatpush1.msra.mxu0 %v111
  %155 = vmatprep.subr.mxu0 0.0
  %156 = vmatpush1.msra.mxu0 %v110
  %157 = vmatprep.subr.mxu0 0.0
  %158 = vmatpush2.msra.mxu0 0.0
  %159 = vmatprep.subr.mxu0 0.0
  %160 = vmatpush2.msra.mxu0 0.0
  %161 = vmatprep.subr.mxu0 0.0
  %162 = vmatpush2.msra.mxu0 0.0
  %163 = vmatprep.subr.mxu0 0.0
  %164 = vmatpush2.msra.mxu0 0.0
  %165 = vmatprep.subr.mxu0 0.0
  %166 = vmatpush2.msra.mxu0 0.0
  %167 = vmatprep.subr.mxu0 0.0
  %168 = vmatpush2.msra.mxu0 0.0
  %169 = vmatprep.subr.mxu0 0.0
  %170 = vmatpush2.msra.mxu0 0.0
  %171 = vmatprep.subr.mxu0 0.0
  %172 = vmatpush2.msra.mxu0 0.0
  %173 = vmatprep.subr.mxu0 0.0
  %174 = vmatpush2.msra.mxu0 0.0
  %175 = vmatprep.subr.mxu0 0.0
  %176 = vmatpush2.msra.mxu0 0.0
  %177 = vmatprep.subr.mxu0 0.0
  %178 = vmatpush2.msra.mxu0 0.0
  %179 = vmatprep.subr.mxu0 0.0
  %180 = vmatpush2.msra.mxu0 0.0
  %181 = vmatprep.subr.mxu0 0.0
  %182 = vmatpush2.msra.mxu0 0.0
  %183 = vmatprep.subr.mxu0 0.0
  %184 = vmatpush2.msra.mxu0 0.0
  %185 = vmatprep.subr.mxu0 0.0
  %186 = vmatpush2.msra.mxu0 0.0
  %187 = vmatprep.subr.mxu0 0.0
  %188 = vmatpush2.msra.mxu0 0.0
  %189 = vmatprep.mubr.f32.mxu0 0.0
  %190 = vmatmul.mubr.f32.gmra.mxu0 %v120
  %v191 = vpop.f32.mrf.mxu0
  %v192 = vadd.f32 0.0, %v191
  %v193 = vpop.f32.mrf.mxu0
  %194 = vdwg.mxu0
  %v195 = vsub.f32 0.0, %v192
  %vm196 = vcmask 23552
  %197 = vst.msk [vmem:[%s3] sm:$0xff] %vm196, %v195
  // Predicated region
  $region14: #{_set_criterion_forward.2} parent=0 // pred_check
    _
  $region15: #{_set_criterion_forward.2} parent=0 // pred_check_branch
    %199 = sbr.rel (0) target = $region17
  $region16: #{_set_criterion_forward.2} parent=0 // pred_region
    _
  $region17: #{_set_criterion_forward.2} parent=0 // pred_fallthru
    _
  // Predicated region
  $region18: #{_set_criterion_forward.2} parent=0 // pred_check
    _
  $region19: #{_set_criterion_forward.2} parent=0 // pred_check_branch
    %201 = sbr.rel (0) target = $region21
  $region20: #{_set_criterion_forward.2} parent=0 // pred_region
    _
  $region21: #{_set_criterion_forward.2} parent=0 // pred_fallthru
    _

// kernel: _set_criterion_forward.3
$region0: #{_set_criterion_forward.3}
  #allocation0 [shape = 'u32[]', space=smem, size = 0x4, offset = 0x4, fixed_abs, tag = 'smem constant byte address 0x4 - core index']
  #allocation1 [shape = 'u32[144,128]{1,0:T(1,128)}', space=vmem, size = 0x12000, scoped, tag = 'internal scratch']
  %s0 = inlined_call_operand.vmem [shape: f32[56,10], index: 0, kind: input, shape index: {}]
  %s1 = inlined_call_operand.vmem [shape: s32[56,2], index: 1, kind: input, shape index: {}]
  %s2 = inlined_call_operand.vmem [shape: f32[4,10], index: 2, kind: input, shape index: {}]
  %s3 = inlined_call_operand.vmem [shape: f32[1,8], index: 3, kind: output, shape index: {}]
  %s4 = sld [smem:[#allocation0]]
  $region22: #{_set_criterion_forward.3} parent=0
    _
  %s6 = ssub.s32 1, %s4
  %s7 = scalar_select 0, %s6, %s4
  // Predicated region
  $region2: #{_set_criterion_forward.3} parent=0 // pred_check
    _
  $region3: #{_set_criterion_forward.3} parent=0 // pred_check_branch
    %9 = sbr.rel (0) target = $region5
  $region4: #{_set_criterion_forward.3} parent=0 // pred_region
    _
  $region5: #{_set_criterion_forward.3} parent=0 // pred_fallthru
    _
  // Predicated region
  $region6: #{_set_criterion_forward.3} parent=0 // pred_check
    _
  $region7: #{_set_criterion_forward.3} parent=0 // pred_check_branch
    %11 = sbr.rel (0) target = $region9
  $region8: #{_set_criterion_forward.3} parent=0 // pred_region
    _
  $region9: #{_set_criterion_forward.3} parent=0 // pred_fallthru
    _
  // Predicated region
  $region10: #{_set_criterion_forward.3} parent=0 // pred_check
    _
  $region11: #{_set_criterion_forward.3} parent=0 // pred_check_branch
    %13 = sbr.rel (0) target = $region13
  $region12: #{_set_criterion_forward.3} parent=0 // pred_region
    _
  $region13: #{_set_criterion_forward.3} parent=0 // pred_fallthru
    _
  %v14 = vld [vmem:[%s0] sm:$0xff]
  %v15 = vld [vmem:[%s0 + $0x8] sm:$0xff]
  %v16 = vld [vmem:[%s0 + $0x10] sm:$0xff]
  %v17 = vld [vmem:[%s0 + $0x18] sm:$0xff]
  %v18 = vld [vmem:[%s0 + $0x20] sm:$0xff]
  %v19 = vld [vmem:[%s0 + $0x28] sm:$0xff]
  %v20 = vld [vmem:[%s0 + $0x30] sm:$0xff]
  %vm21 = vcmp.gt.f32.partialorder %v14, -1e+29
  %vm22 = vcmp.gt.f32.partialorder %v15, -1e+29
  %vm23 = vcmp.gt.f32.partialorder %v16, -1e+29
  %vm24 = vcmp.gt.f32.partialorder %v17, -1e+29
  %vm25 = vcmp.gt.f32.partialorder %v18, -1e+29
  %vm26 = vcmp.gt.f32.partialorder %v19, -1e+29
  %vm27 = vcmp.gt.f32.partialorder %v20, -1e+29
  %vm28 = vcmask 80896
  %v29 = vsel %vm28, %v14, -inf
  %30 = vmax.xlane.f32.xlu0 %v29
  %v31 = vpop.xlane.xlu0 %30
  %v32 = vsel %vm28, %v15, -inf
  %33 = vmax.xlane.f32.xlu0 %v32
  %v34 = vpop.xlane.xlu0 %33
  %v35 = vsel %vm28, %v16, -inf
  %36 = vmax.xlane.f32.xlu0 %v35
  %v37 = vpop.xlane.xlu0 %36
  %v38 = vsel %vm28, %v17, -inf
  %39 = vmax.xlane.f32.xlu0 %v38
  %v40 = vpop.xlane.xlu0 %39
  %v41 = vsel %vm28, %v18, -inf
  %42 = vmax.xlane.f32.xlu0 %v41
  %v43 = vpop.xlane.xlu0 %42
  %v44 = vsel %vm28, %v19, -inf
  %45 = vmax.xlane.f32.xlu0 %v44
  %v46 = vpop.xlane.xlu0 %45
  %v47 = vsel %vm28, %v20, -inf
  %48 = vmax.xlane.f32.xlu0 %v47
  %v49 = vpop.xlane.xlu0 %48
  %v50 = vsub.f32 %v14, %v31
  %v51 = vsub.f32 %v15, %v34
  %v52 = vsub.f32 %v16, %v37
  %v53 = vsub.f32 %v17, %v40
  %v54 = vsub.f32 %v18, %v43
  %v55 = vsub.f32 %v19, %v46
  %v56 = vsub.f32 %v20, %v49
  %v57 = vmul.f32 %v50, 1.442695
  %v58 = vpow.pop %v57
  %v59 = vmul.f32 %v51, 1.442695
  %v60 = vpow.pop %v59
  %v61 = vmul.f32 %v52, 1.442695
  %v62 = vpow.pop %v61
  %v63 = vmul.f32 %v53, 1.442695
  %v64 = vpow.pop %v63
  %v65 = vmul.f32 %v54, 1.442695
  %v66 = vpow.pop %v65
  %v67 = vmul.f32 %v55, 1.442695
  %v68 = vpow.pop %v67
  %v69 = vmul.f32 %v56, 1.442695
  %v70 = vpow.pop %v69
  %v71 = vsel %vm21, %v58, 0.0
  %v72 = vsel %vm22, %v60, 0.0
  %v73 = vsel %vm23, %v62, 0.0
  %v74 = vsel %vm24, %v64, 0.0
  %v75 = vsel %vm25, %v66, 0.0
  %v76 = vsel %vm26, %v68, 0.0
  %v77 = vsel %vm27, %v70, 0.0
  %v78 = vsel %vm28, %v71, 0.0
  %79 = vadd.xlane.f32.xlu0 %v78
  %v80 = vpop.xlane.xlu0 %79
  %v81 = vsel %vm28, %v72, 0.0
  %82 = vadd.xlane.f32.xlu0 %v81
  %v83 = vpop.xlane.xlu0 %82
  %v84 = vsel %vm28, %v73, 0.0
  %85 = vadd.xlane.f32.xlu0 %v84
  %v86 = vpop.xlane.xlu0 %85
  %v87 = vsel %vm28, %v74, 0.0
  %88 = vadd.xlane.f32.xlu0 %v87
  %v89 = vpop.xlane.xlu0 %88
  %v90 = vsel %vm28, %v75, 0.0
  %91 = vadd.xlane.f32.xlu0 %v90
  %v92 = vpop.xlane.xlu0 %91
  %v93 = vsel %vm28, %v76, 0.0
  %94 = vadd.xlane.f32.xlu0 %v93
  %v95 = vpop.xlane.xlu0 %94
  %v96 = vsel %vm28, %v77, 0.0
  %97 = vadd.xlane.f32.xlu0 %v96
  %v98 = vpop.xlane.xlu0 %97
  %v99 = vrcp.pop %v80
  %v100 = vmul.f32 %v71, %v99
  %v101 = vrcp.pop %v83
  %v102 = vmul.f32 %v72, %v101
  %v103 = vrcp.pop %v86
  %v104 = vmul.f32 %v73, %v103
  %v105 = vrcp.pop %v89
  %v106 = vmul.f32 %v74, %v105
  %v107 = vrcp.pop %v92
  %v108 = vmul.f32 %v75, %v107
  %v109 = vrcp.pop %v95
  %v110 = vmul.f32 %v76, %v109
  %v111 = vrcp.pop %v98
  %v112 = vmul.f32 %v77, %v111
  %v113 = vsel %vm28, %v100, -inf
  %114 = vmax.xlane.f32.xlu0 %v113
  %v115 = vpop.xlane.xlu0 %114
  %v116 = vsel %vm28, %v102, -inf
  %117 = vmax.xlane.f32.xlu0 %v116
  %v118 = vpop.xlane.xlu0 %117
  %v119 = vsel %vm28, %v104, -inf
  %120 = vmax.xlane.f32.xlu0 %v119
  %v121 = vpop.xlane.xlu0 %120
  %v122 = vsel %vm28, %v106, -inf
  %123 = vmax.xlane.f32.xlu0 %v122
  %v124 = vpop.xlane.xlu0 %123
  %v125 = vsel %vm28, %v108, -inf
  %126 = vmax.xlane.f32.xlu0 %v125
  %v127 = vpop.xlane.xlu0 %126
  %v128 = vsel %vm28, %v110, -inf
  %129 = vmax.xlane.f32.xlu0 %v128
  %v130 = vpop.xlane.xlu0 %129
  %v131 = vsel %vm28, %v112, -inf
  %132 = vmax.xlane.f32.xlu0 %v131
  %v133 = vpop.xlane.xlu0 %132
  %v134 = vsub.f32 %v100, %v115
  %v135 = vsub.f32 %v102, %v118
  %v136 = vsub.f32 %v104, %v121
  %v137 = vsub.f32 %v106, %v124
  %v138 = vsub.f32 %v108, %v127
  %v139 = vsub.f32 %v110, %v130
  %v140 = vsub.f32 %v112, %v133
  %v141 = vmul.f32 %v134, 1.442695
  %v142 = vpow.pop %v141
  %v143 = vmul.f32 %v135, 1.442695
  %v144 = vpow.pop %v143
  %v145 = vmul.f32 %v136, 1.442695
  %v146 = vpow.pop %v145
  %v147 = vmul.f32 %v137, 1.442695
  %v148 = vpow.pop %v147
  %v149 = vmul.f32 %v138, 1.442695
  %v150 = vpow.pop %v149
  %v151 = vmul.f32 %v139, 1.442695
  %v152 = vpow.pop %v151
  %v153 = vmul.f32 %v140, 1.442695
  %v154 = vpow.pop %v153
  %v155 = vsel %vm21, %v142, 0.0
  %v156 = vsel %vm22, %v144, 0.0
  %v157 = vsel %vm23, %v146, 0.0
  %v158 = vsel %vm24, %v148, 0.0
  %v159 = vsel %vm25, %v150, 0.0
  %v160 = vsel %vm26, %v152, 0.0
  %v161 = vsel %vm27, %v154, 0.0
  %v162 = vsel %vm28, %v155, 0.0
  %163 = vadd.xlane.f32.xlu0 %v162
  %v164 = vpop.xlane.xlu0 %163
  %v165 = vsel %vm28, %v156, 0.0
  %166 = vadd.xlane.f32.xlu0 %v165
  %v167 = vpop.xlane.xlu0 %166
  %v168 = vsel %vm28, %v157, 0.0
  %169 = vadd.xlane.f32.xlu0 %v168
  %v170 = vpop.xlane.xlu0 %169
  %v171 = vsel %vm28, %v158, 0.0
  %172 = vadd.xlane.f32.xlu0 %v171
  %v173 = vpop.xlane.xlu0 %172
  %v174 = vsel %vm28, %v159, 0.0
  %175 = vadd.xlane.f32.xlu0 %v174
  %v176 = vpop.xlane.xlu0 %175
  %v177 = vsel %vm28, %v160, 0.0
  %178 = vadd.xlane.f32.xlu0 %v177
  %v179 = vpop.xlane.xlu0 %178
  %v180 = vsel %vm28, %v161, 0.0
  %181 = vadd.xlane.f32.xlu0 %v180
  %v182 = vpop.xlane.xlu0 %181
  %v183 = vlog2.pop %v164
  %v184 = vmul.f32 %v183, 0.6931472
  %v185 = vlog2.pop %v167
  %v186 = vmul.f32 %v185, 0.6931472
  %v187 = vlog2.pop %v170
  %v188 = vmul.f32 %v187, 0.6931472
  %v189 = vlog2.pop %v173
  %v190 = vmul.f32 %v189, 0.6931472
  %v191 = vlog2.pop %v176
  %v192 = vmul.f32 %v191, 0.6931472
  %v193 = vlog2.pop %v179
  %v194 = vmul.f32 %v193, 0.6931472
  %v195 = vlog2.pop %v182
  %v196 = vmul.f32 %v195, 0.6931472
  %v197 = vadd.f32 %v115, %v184
  %v198 = vadd.f32 %v118, %v186
  %v199 = vadd.f32 %v121, %v188
  %v200 = vadd.f32 %v124, %v190
  %v201 = vadd.f32 %v127, %v192
  %v202 = vadd.f32 %v130, %v194
  %v203 = vadd.f32 %v133, %v196
  %v204 = vsub.f32 %v100, %v197
  %v205 = vsub.f32 %v102, %v198
  %v206 = vsub.f32 %v104, %v199
  %v207 = vsub.f32 %v106, %v200
  %v208 = vsub.f32 %v108, %v201
  %v209 = vsub.f32 %v110, %v202
  %v210 = vsub.f32 %v112, %v203
  %v211 = vld [vmem:[%s1] sm:$0xff]
  %v212 = vld [vmem:[%s1 + $0x8] sm:$0xff]
  %v213 = vld [vmem:[%s1 + $0x10] sm:$0xff]
  %v214 = vld [vmem:[%s1 + $0x18] sm:$0xff]
  %v215 = vld [vmem:[%s1 + $0x20] sm:$0xff]
  %v216 = vld [vmem:[%s1 + $0x28] sm:$0xff]
  %v217 = vld [vmem:[%s1 + $0x30] sm:$0xff]
  %v218 = vlaneseq
  %v219 = vand.u32 %v218, 127
  %220 = vset.pattern.permute.xlu0 0
  %221 = vperm.xlu0 %220, %v211
  %v222 = vpop.permute.xlu0 %221
  %223 = vset.pattern.permute.xlu0 0
  %224 = vperm.xlu0 %223, %v212
  %v225 = vpop.permute.xlu0 %224
  %226 = vset.pattern.permute.xlu0 0
  %227 = vperm.xlu0 %226, %v213
  %v228 = vpop.permute.xlu0 %227
  %229 = vset.pattern.permute.xlu0 0
  %230 = vperm.xlu0 %229, %v214
  %v231 = vpop.permute.xlu0 %230
  %232 = vset.pattern.permute.xlu0 0
  %233 = vperm.xlu0 %232, %v215
  %v234 = vpop.permute.xlu0 %233
  %235 = vset.pattern.permute.xlu0 0
  %236 = vperm.xlu0 %235, %v216
  %v237 = vpop.permute.xlu0 %236
  %238 = vset.pattern.permute.xlu0 0
  %239 = vperm.xlu0 %238, %v217
  %v240 = vpop.permute.xlu0 %239
  %vm241 = vcmp.eq.s32.totalorder %v219, %v222
  %vm242 = vcmp.eq.s32.totalorder %v219, %v225
  %vm243 = vcmp.eq.s32.totalorder %v219, %v228
  %vm244 = vcmp.eq.s32.totalorder %v219, %v231
  %vm245 = vcmp.eq.s32.totalorder %v219, %v234
  %vm246 = vcmp.eq.s32.totalorder %v219, %v237
  %vm247 = vcmp.eq.s32.totalorder %v219, %v240
  %v248 = vsel %vm241, 1, 0
  %v249 = vsel %vm242, 1, 0
  %v250 = vsel %vm243, 1, 0
  %v251 = vsel %vm244, 1, 0
  %v252 = vsel %vm245, 1, 0
  %v253 = vsel %vm246, 1, 0
  %v254 = vsel %vm247, 1, 0
  %v255 = vcvt.s32.f32 %v248
  %v256 = vcvt.s32.f32 %v249
  %v257 = vcvt.s32.f32 %v250
  %v258 = vcvt.s32.f32 %v251
  %v259 = vcvt.s32.f32 %v252
  %v260 = vcvt.s32.f32 %v253
  %v261 = vcvt.s32.f32 %v254
  %262 = vset.pattern.permute.xlu0 1
  %263 = vperm.xlu0 %262, %v211
  %v264 = vpop.permute.xlu0 %263
  %265 = vset.pattern.permute.xlu0 1
  %266 = vperm.xlu0 %265, %v212
  %v267 = vpop.permute.xlu0 %266
  %268 = vset.pattern.permute.xlu0 1
  %269 = vperm.xlu0 %268, %v213
  %v270 = vpop.permute.xlu0 %269
  %271 = vset.pattern.permute.xlu0 1
  %272 = vperm.xlu0 %271, %v214
  %v273 = vpop.permute.xlu0 %272
  %274 = vset.pattern.permute.xlu0 1
  %275 = vperm.xlu0 %274, %v215
  %v276 = vpop.permute.xlu0 %275
  %277 = vset.pattern.permute.xlu0 1
  %278 = vperm.xlu0 %277, %v216
  %v279 = vpop.permute.xlu0 %278
  %280 = vset.pattern.permute.xlu0 1
  %281 = vperm.xlu0 %280, %v217
  %v282 = vpop.permute.xlu0 %281
  %vm283 = vcmp.eq.s32.totalorder %v219, %v264
  %vm284 = vcmp.eq.s32.totalorder %v219, %v267
  %vm285 = vcmp.eq.s32.totalorder %v219, %v270
  %vm286 = vcmp.eq.s32.totalorder %v219, %v273
  %vm287 = vcmp.eq.s32.totalorder %v219, %v276
  %vm288 = vcmp.eq.s32.totalorder %v219, %v279
  %vm289 = vcmp.eq.s32.totalorder %v219, %v282
  %v290 = vsel %vm283, 1, 0
  %v291 = vsel %vm284, 1, 0
  %v292 = vsel %vm285, 1, 0
  %v293 = vsel %vm286, 1, 0
  %v294 = vsel %vm287, 1, 0
  %v295 = vsel %vm288, 1, 0
  %v296 = vsel %vm289, 1, 0
  %v297 = vcvt.s32.f32 %v290
  %v298 = vcvt.s32.f32 %v291
  %v299 = vcvt.s32.f32 %v292
  %v300 = vcvt.s32.f32 %v293
  %v301 = vcvt.s32.f32 %v294
  %v302 = vcvt.s32.f32 %v295
  %v303 = vcvt.s32.f32 %v296
  %v304 = vld [vmem:[%s2] sm:$0xf]
  %vm305 = vcmask 31744
  %v307 = vsel %vm305, %v297, 0
  %v310 = vsel %vm305, %v298, 0
  %v313 = vsel %vm305, %v299, 0
  %v316 = vsel %vm305, %v300, 0
  %v319 = vsel %vm305, %v301, 0
  %v322 = vsel %vm305, %v302, 0
  %v325 = vsel %vm305, %v303, 0
  %vm327 = vcmask 1043456
  %v329 = vsel %vm327, %v304, 0
  %331 = vmatprep.subr.mxu0 0.0
  %332 = vmatpush1.msra.mxu0 0.0
  %333 = vmatprep.subr.mxu0 0.0
  %334 = vmatpush1.msra.mxu0 0.0
  %335 = vmatprep.subr.mxu0 0.0
  %336 = vmatpush1.msra.mxu0 0.0
  %337 = vmatprep.subr.mxu0 0.0
  %338 = vmatpush1.msra.mxu0 0.0
  %339 = vmatprep.subr.mxu0 0.0
  %340 = vmatpush1.msra.mxu0 0.0
  %341 = vmatprep.subr.mxu0 0.0
  %342 = vmatpush1.msra.mxu0 0.0
  %343 = vmatprep.subr.mxu0 0.0
  %344 = vmatpush1.msra.mxu0 0.0
  %345 = vmatprep.subr.mxu0 0.0
  %346 = vmatpush1.msra.mxu0 0.0
  %347 = vmatprep.subr.mxu0 0.0
  %348 = vmatpush1.msra.mxu0 0.0
  %349 = vmatprep.subr.mxu0 0.0
  %350 = vmatpush1.msra.mxu0 0.0
  %351 = vmatprep.subr.mxu0 0.0
  %352 = vmatpush1.msra.mxu0 0.0
  %353 = vmatprep.subr.mxu0 0.0
  %354 = vmatpush1.msra.mxu0 0.0
  %355 = vmatprep.subr.mxu0 0.0
  %356 = vmatpush1.msra.mxu0 0.0
  %357 = vmatprep.subr.mxu0 0.0
  %358 = vmatpush1.msra.mxu0 0.0
  %359 = vmatprep.subr.mxu0 0.0
  %360 = vmatpush1.msra.mxu0 0.0
  %361 = vmatprep.subr.mxu0 0.0
  %362 = vmatpush1.msra.mxu0 %v329
  %363 = vmatprep.subr.mxu0 0.0
  %364 = vmatpush2.msra.mxu0 0.0
  %365 = vmatprep.subr.mxu0 0.0
  %366 = vmatpush2.msra.mxu0 0.0
  %367 = vmatprep.subr.mxu0 0.0
  %368 = vmatpush2.msra.mxu0 0.0
  %369 = vmatprep.subr.mxu0 0.0
  %370 = vmatpush2.msra.mxu0 0.0
  %371 = vmatprep.subr.mxu0 0.0
  %372 = vmatpush2.msra.mxu0 0.0
  %373 = vmatprep.subr.mxu0 0.0
  %374 = vmatpush2.msra.mxu0 0.0
  %375 = vmatprep.subr.mxu0 0.0
  %376 = vmatpush2.msra.mxu0 0.0
  %377 = vmatprep.subr.mxu0 0.0
  %378 = vmatpush2.msra.mxu0 0.0
  %379 = vmatprep.subr.mxu0 0.0
  %380 = vmatpush2.msra.mxu0 0.0
  %381 = vmatprep.subr.mxu0 0.0
  %382 = vmatpush2.msra.mxu0 0.0
  %383 = vmatprep.subr.mxu0 0.0
  %384 = vmatpush2.msra.mxu0 0.0
  %385 = vmatprep.subr.mxu0 0.0
  %386 = vmatpush2.msra.mxu0 0.0
  %387 = vmatprep.subr.mxu0 0.0
  %388 = vmatpush2.msra.mxu0 0.0
  %389 = vmatprep.subr.mxu0 0.0
  %390 = vmatpush2.msra.mxu0 0.0
  %391 = vmatprep.subr.mxu0 0.0
  %392 = vmatpush2.msra.mxu0 0.0
  %393 = vmatprep.subr.mxu0 0.0
  %394 = vmatpush2.msra.mxu0 0.0
  %395 = vmatprep.mubr.f32.mxu0 0.0
  %396 = vmatmul.mubr.f32.gmra.mxu0 %v307
  %v397 = vpop.f32.mrf.mxu0
  %v398 = vadd.f32 0.0, %v397
  %v399 = vpop.f32.mrf.mxu0
  %400 = vmatprep.mubr.f32.mxu0 0.0
  %401 = vmatmul.mubr.f32.gmra.mxu0 %v310
  %v402 = vpop.f32.mrf.mxu0
  %v403 = vadd.f32 0.0, %v402
  %v404 = vpop.f32.mrf.mxu0
  %405 = vmatprep.mubr.f32.mxu0 0.0
  %406 = vmatmul.mubr.f32.gmra.mxu0 %v313
  %v407 = vpop.f32.mrf.mxu0
  %v408 = vadd.f32 0.0, %v407
  %v409 = vpop.f32.mrf.mxu0
  %410 = vmatprep.mubr.f32.mxu0 0.0
  %411 = vmatmul.mubr.f32.gmra.mxu0 %v316
  %v412 = vpop.f32.mrf.mxu0
  %v413 = vadd.f32 0.0, %v412
  %v414 = vpop.f32.mrf.mxu0
  %415 = vmatprep.mubr.f32.mxu0 0.0
  %416 = vmatmul.mubr.f32.gmra.mxu0 %v319
  %v417 = vpop.f32.mrf.mxu0
  %v418 = vadd.f32 0.0, %v417
  %v419 = vpop.f32.mrf.mxu0
  %420 = vmatprep.mubr.f32.mxu0 0.0
  %421 = vmatmul.mubr.f32.gmra.mxu0 %v322
  %v422 = vpop.f32.mrf.mxu0
  %v423 = vadd.f32 0.0, %v422
  %v424 = vpop.f32.mrf.mxu0
  %425 = vmatprep.mubr.f32.mxu0 0.0
  %426 = vmatmul.mubr.f32.gmra.mxu0 %v325
  %v427 = vpop.f32.mrf.mxu0
  %v428 = vadd.f32 0.0, %v427
  %v429 = vpop.f32.mrf.mxu0
  %430 = vdwg.mxu0
  %v431 = vmul.f32 %v398, %v255
  %v432 = vmul.f32 %v403, %v256
  %v433 = vmul.f32 %v408, %v257
  %v434 = vmul.f32 %v413, %v258
  %v435 = vmul.f32 %v418, %v259
  %v436 = vmul.f32 %v423, %v260
  %v437 = vmul.f32 %v428, %v261
  %v438 = vsel %vm28, %v431, 0.0
  %439 = vadd.xlane.f32.xlu0 %v438
  %v440 = vpop.xlane.xlu0 %439
  %v441 = vsel %vm28, %v432, 0.0
  %442 = vadd.xlane.f32.xlu0 %v441
  %v443 = vpop.xlane.xlu0 %442
  %v444 = vsel %vm28, %v433, 0.0
  %445 = vadd.xlane.f32.xlu0 %v444
  %v446 = vpop.xlane.xlu0 %445
  %v447 = vsel %vm28, %v434, 0.0
  %448 = vadd.xlane.f32.xlu0 %v447
  %v449 = vpop.xlane.xlu0 %448
  %v450 = vsel %vm28, %v435, 0.0
  %451 = vadd.xlane.f32.xlu0 %v450
  %v452 = vpop.xlane.xlu0 %451
  %v453 = vsel %vm28, %v436, 0.0
  %454 = vadd.xlane.f32.xlu0 %v453
  %v455 = vpop.xlane.xlu0 %454
  %v456 = vsel %vm28, %v437, 0.0
  %457 = vadd.xlane.f32.xlu0 %v456
  %v458 = vpop.xlane.xlu0 %457
  %v459 = vmul.f32 %v255, %v204
  %v460 = vmul.f32 %v256, %v205
  %v461 = vmul.f32 %v257, %v206
  %v462 = vmul.f32 %v258, %v207
  %v463 = vmul.f32 %v259, %v208
  %v464 = vmul.f32 %v260, %v209
  %v465 = vmul.f32 %v261, %v210
  %v466 = vsel %vm28, %v459, 0.0
  %467 = vadd.xlane.f32.xlu0 %v466
  %v468 = vpop.xlane.xlu0 %467
  %v469 = vsel %vm28, %v460, 0.0
  %470 = vadd.xlane.f32.xlu0 %v469
  %v471 = vpop.xlane.xlu0 %470
  %v472 = vsel %vm28, %v461, 0.0
  %473 = vadd.xlane.f32.xlu0 %v472
  %v474 = vpop.xlane.xlu0 %473
  %v475 = vsel %vm28, %v462, 0.0
  %476 = vadd.xlane.f32.xlu0 %v475
  %v477 = vpop.xlane.xlu0 %476
  %v478 = vsel %vm28, %v463, 0.0
  %479 = vadd.xlane.f32.xlu0 %v478
  %v480 = vpop.xlane.xlu0 %479
  %v481 = vsel %vm28, %v464, 0.0
  %482 = vadd.xlane.f32.xlu0 %v481
  %v483 = vpop.xlane.xlu0 %482
  %v484 = vsel %vm28, %v465, 0.0
  %485 = vadd.xlane.f32.xlu0 %v484
  %v486 = vpop.xlane.xlu0 %485
  %v487 = vsub.f32 0.0, %v468
  %v488 = vsub.f32 0.0, %v471
  %v489 = vsub.f32 0.0, %v474
  %v490 = vsub.f32 0.0, %v477
  %v491 = vsub.f32 0.0, %v480
  %v492 = vsub.f32 0.0, %v483
  %v493 = vsub.f32 0.0, %v486
  %v494 = vmul.f32 %v440, %v487
  %v495 = vmul.f32 %v443, %v488
  %v496 = vmul.f32 %v446, %v489
  %v497 = vmul.f32 %v449, %v490
  %v498 = vmul.f32 %v452, %v491
  %v499 = vmul.f32 %v455, %v492
  %v500 = vmul.f32 %v458, %v493
  %v501 = vmul.f32 %v297, %v494
  %v502 = vmul.f32 %v298, %v495
  %v503 = vmul.f32 %v299, %v496
  %v504 = vmul.f32 %v300, %v497
  %v505 = vmul.f32 %v301, %v498
  %v506 = vmul.f32 %v302, %v499
  %v507 = vmul.f32 %v303, %v500
  %v508 = vsel %vm305, %v501, 0.0
  %v509 = vsel %vm305, %v502, 0.0
  %v510 = vadd.f32 %v508, %v509
  %v511 = vsel %vm305, %v503, 0.0
  %v512 = vadd.f32 %v510, %v511
  %v513 = vsel %vm305, %v504, 0.0
  %v514 = vadd.f32 %v512, %v513
  %v515 = vsel %vm305, %v505, 0.0
  %v516 = vadd.f32 %v514, %v515
  %v517 = vsel %vm305, %v506, 0.0
  %v518 = vadd.f32 %v516, %v517
  %v519 = vsel %vm305, %v507, 0.0
  %v520 = vadd.f32 %v518, %v519
  %v521 = vrot.slane %v520, 4
  %v522 = vadd.f32 %v520, %v521
  %v523 = vrot.slane %v522, 2
  %v524 = vadd.f32 %v522, %v523
  %v525 = vrot.slane %v524, 1
  %v526 = vadd.f32 %v524, %v525
  %v527 = vmul.f32 %v297, %v440
  %v528 = vmul.f32 %v298, %v443
  %v529 = vmul.f32 %v299, %v446
  %v530 = vmul.f32 %v300, %v449
  %v531 = vmul.f32 %v301, %v452
  %v532 = vmul.f32 %v302, %v455
  %v533 = vmul.f32 %v303, %v458
  %v534 = vsel %vm305, %v527, 0.0
  %v535 = vsel %vm305, %v528, 0.0
  %v536 = vadd.f32 %v534, %v535
  %v537 = vsel %vm305, %v529, 0.0
  %v538 = vadd.f32 %v536, %v537
  %v539 = vsel %vm305, %v530, 0.0
  %v540 = vadd.f32 %v538, %v539
  %v541 = vsel %vm305, %v531, 0.0
  %v542 = vadd.f32 %v540, %v541
  %v543 = vsel %vm305, %v532, 0.0
  %v544 = vadd.f32 %v542, %v543
  %v545 = vsel %vm305, %v533, 0.0
  %v546 = vadd.f32 %v544, %v545
  %v547 = vrot.slane %v546, 4
  %v548 = vadd.f32 %v546, %v547
  %v549 = vrot.slane %v548, 2
  %v550 = vadd.f32 %v548, %v549
  %v551 = vrot.slane %v550, 1
  %v552 = vadd.f32 %v550, %v551
  %554 = vrot.lane.b32.xlu0 %v552, 4
  %v555 = vpop.permute.xlu0 %554
  %v557 = vsel %vm305, %v526, %v555
  %vm558 = vcmask 57344
  %559 = vst.msk [vmem:[%s3] sm:$0x1] %vm558, %v557
  // Predicated region
  $region14: #{_set_criterion_forward.3} parent=0 // pred_check
    _
  $region15: #{_set_criterion_forward.3} parent=0 // pred_check_branch
    %561 = sbr.rel (0) target = $region17
  $region16: #{_set_criterion_forward.3} parent=0 // pred_region
    _
  $region17: #{_set_criterion_forward.3} parent=0 // pred_fallthru
    _
  // Predicated region
  $region18: #{_set_criterion_forward.3} parent=0 // pred_check
    _
  $region19: #{_set_criterion_forward.3} parent=0 // pred_check_branch
    %563 = sbr.rel (0) target = $region21
  $region20: #{_set_criterion_forward.3} parent=0 // pred_region
    _
  $region21: #{_set_criterion_forward.3} parent=0 // pred_fallthru
    _

</llo_original>
